<compile_context>
chip_gen: v6e
topology: v6e:2x2x1
jax: 0.10.0
libtpu: 0.0.40
codegen_flags: <defaults>
</compile_context>

<pallas_src>
import jax
import jax.numpy as jnp
from jax.experimental import pallas as pl
from jax.experimental.pallas import tpu as pltpu

ACTION_NUM = 4
HIDDEN = 32

OUT_W = 128          # lane-dense packed output width
MAX_TILE_B = 1024    # batch rows per grid step (fits comfortably on v5e/v6e/v7x)

_SELU_ALPHA = 1.6732632423543772
_SELU_SCALE = 1.0507009873554805


def _selu(x):
    # Single select; exp only ever sees non-positive arguments.
    return _SELU_SCALE * jnp.where(
        x > 0.0, x, _SELU_ALPHA * (jnp.exp(jnp.minimum(x, 0.0)) - 1.0)
    )


def _round_up(x, m):
    return ((x + m - 1) // m) * m


def _actor_kernel(x_ref, w1_ref, b1_ref, w2_ref, b2_ref, w3_ref, b3_ref, out_ref):
    x = x_ref[...]                                                    # [T, S] bf16

    h1 = jnp.dot(x, w1_ref[...], preferred_element_type=jnp.float32) + b1_ref[...]
    h1 = _selu(h1)                                                    # [T, 32] f32

    h2 = jnp.dot(h1.astype(w2_ref.dtype), w2_ref[...],
                 preferred_element_type=jnp.float32) + b2_ref[...]
    h2 = _selu(h2)                                                    # [T, 32] f32

    logits = jnp.dot(h2.astype(w3_ref.dtype), w3_ref[...],
                     preferred_element_type=jnp.float32) + b3_ref[...]  # [T, A]

    # Numerically stable softmax / log-softmax over the action axis.
    m = jnp.max(logits, axis=1, keepdims=True)
    z = logits - m
    e = jnp.exp(z)
    s = jnp.sum(e, axis=1, keepdims=True)
    logp = z - jnp.log(s)                                             # [T, A]
    probs = e / s                                                     # [T, A]
    ent = -jnp.sum(probs * logp, axis=1, keepdims=True)               # [T, 1]

    A = logp.shape[1]
    # Lane-dense [T, 128] output slab: logp in lanes 0..A-1, entropy in lane A.
    out_ref[...] = jnp.zeros_like(out_ref)
    out_ref[:, 0:A] = logp
    out_ref[:, A:A + 1] = ent


@jax.jit
def _actor_forward_pallas(state, w1, b1, w2, b2, w3, b3):
    """Runs the fused MLP + softmax kernel. Returns (logp [B,A], entropy [B])."""
    B, S = state.shape
    A = w3.shape[1]
    assert A + 1 <= OUT_W

    # Batch tiling: multiple of 16 (bf16 sublane packing), capped at MAX_TILE_B.
    tile = min(MAX_TILE_B, _round_up(B, 16))
    b_pad = _round_up(B, tile)
    grid = (b_pad // tile,)

    x = state.astype(jnp.bfloat16)
    if b_pad != B:
        x = jnp.pad(x, ((0, b_pad - B), (0, 0)))

    out = pl.pallas_call(
        _actor_kernel,
        out_shape=jax.ShapeDtypeStruct((b_pad, OUT_W), jnp.float32),
        grid_spec=pltpu.PrefetchScalarGridSpec(
            num_scalar_prefetch=0,
            grid=grid,
            in_specs=[
                pl.BlockSpec((tile, S), lambda i: (i, 0)),      # state tile
                pl.BlockSpec(w1.shape, lambda i: (0, 0)),       # weights/biases:
                pl.BlockSpec(b1.shape, lambda i: (0, 0)),       # constant maps ->
                pl.BlockSpec(w2.shape, lambda i: (0, 0)),       # VMEM-resident
                pl.BlockSpec(b2.shape, lambda i: (0, 0)),
                pl.BlockSpec(w3.shape, lambda i: (0, 0)),
                pl.BlockSpec(b3.shape, lambda i: (0, 0)),
            ],
            out_specs=pl.BlockSpec((tile, OUT_W), lambda i: (i, 0)),
        ),
        compiler_params=pltpu.CompilerParams(
            dimension_semantics=("parallel",),
        ),
    )(
        x,
        w1.astype(jnp.bfloat16), b1,
        w2.astype(jnp.bfloat16), b2,
        w3.astype(jnp.bfloat16), b3,
    )

    logp = out[:B, :A]
    ent = out[:B, A]
    return logp, ent


def actor_forward(params, state, key, action=None):
    """Mirrors Actor.forward: returns (act, act_log_prob, act_entropy)."""
    w1, b1, w2, b2, w3, b3 = params
    logp, ent = _actor_forward_pallas(state, w1, b1, w2, b2, w3, b3)
    if action is None:
        # Categorical(probs).sample()  ==  Gumbel-max over (normalized) log-probs.
        act = jax.random.categorical(key, logp, axis=-1)
    else:
        act = action
    act_flat = act.reshape(-1)
    act_log_prob = jnp.take_along_axis(logp, act_flat[:, None], axis=1)[:, 0]
    return act, act_log_prob, ent


def _actor_reference(params, state):
    """Pure-JAX f32 reference for correctness checking."""
    w1, b1, w2, b2, w3, b3 = params
    h1 = _selu(state @ w1 + b1)
    h2 = _selu(h1 @ w2 + b2)
    logits = h2 @ w3 + b3
    logp = jax.nn.log_softmax(logits, axis=1)
    ent = -jnp.sum(jnp.exp(logp) * logp, axis=1)
    return logp, ent


def init_actor_params(key, state_dim, action_num):
    """Deterministic init matching the nn.Linear shapes (stored transposed)."""
    k1, k2, k3, k4, k5, k6 = jax.random.split(key, 6)

    def uniform(k, shape, fan_in):
        bound = 1.0 / jnp.sqrt(fan_in)
        return jax.random.uniform(k, shape, jnp.float32, -bound, bound)

    w1 = uniform(k1, (state_dim, HIDDEN), state_dim)     # fc1.weight.T
    b1 = uniform(k2, (1, HIDDEN), state_dim)             # fc1.bias
    w2 = uniform(k3, (HIDDEN, HIDDEN), HIDDEN)           # fc2.weight.T
    b2 = uniform(k4, (1, HIDDEN), HIDDEN)                # fc2.bias
    w3 = uniform(k5, (HIDDEN, action_num), HIDDEN)       # fc3.weight.T
    b3 = uniform(k6, (1, action_num), HIDDEN)            # fc3.bias
    return (w1, b1, w2, b2, w3, b3)


if __name__ == "__main__":
    key = jax.random.PRNGKey(0)
    k_param, k_state, k_sample, k_state2 = jax.random.split(key, 4)

    batch = 4
    state_dim = 8  # small gridworld state vector

    params = init_actor_params(k_param, state_dim, ACTION_NUM)
    state = jax.random.normal(k_state, (batch, state_dim), jnp.float32)

    # action=None path (sample from the categorical distribution)
    act, act_log_prob, act_entropy = actor_forward(params, state, k_sample)
    jax.block_until_ready((act, act_log_prob, act_entropy))
    assert act.shape == (batch,)
    assert act_log_prob.shape == (batch,)
    assert act_entropy.shape == (batch,)

    # action-provided path
    given_action = jnp.array([0, 1, 2, 3], dtype=jnp.int32)
    act2, lp2, ent2 = actor_forward(params, state, k_sample, action=given_action)
    jax.block_until_ready((act2, lp2, ent2))
    assert bool(jnp.all(act2 == given_action))

    # Larger batch: exercises multi-step grid (batch > tile) + padding path,
    # and checks numerics against the pure-JAX f32 reference (bf16 tolerance).
    big_batch = 2500
    state_big = jax.random.normal(k_state2, (big_batch, state_dim), jnp.float32)
    logp_k, ent_k = _actor_forward_pallas(state_big, *params)
    jax.block_until_ready((logp_k, ent_k))
    logp_r, ent_r = _actor_reference(params, state_big)
    assert logp_k.shape == (big_batch, ACTION_NUM)
    assert ent_k.shape == (big_batch,)
    assert bool(jnp.allclose(logp_k, logp_r, atol=0.1))
    assert bool(jnp.allclose(ent_k, ent_r, atol=0.1))
    assert bool(jnp.all(ent_k >= -1e-3))
    assert bool(jnp.all(ent_k <= jnp.log(ACTION_NUM) + 1e-2))

    print("KERNEL_OK")
</pallas_src>

<mosaic_0001>
module attributes {stable_mosaic.version = 11 : i64} {
  func.func @_actor_kernel(%arg0: i32, %arg1: memref<16x8xbf16, #tpu.memory_space<vmem>>, %arg2: memref<8x32xbf16, #tpu.memory_space<vmem>>, %arg3: memref<1x32xf32, #tpu.memory_space<vmem>>, %arg4: memref<32x32xbf16, #tpu.memory_space<vmem>>, %arg5: memref<1x32xf32, #tpu.memory_space<vmem>>, %arg6: memref<32x4xbf16, #tpu.memory_space<vmem>>, %arg7: memref<1x4xf32, #tpu.memory_space<vmem>>, %arg8: memref<16x128xf32, #tpu.memory_space<vmem>>) attributes {dimension_semantics = [#tpu.dimension_semantics<parallel>], iteration_bounds = array<i64: 1>, scalar_prefetch = 0 : i64, scratch_operands = 0 : i64, tpu.core_type = #tpu.core_type<tc>, window_params = [{transform_indices = @transform_0, window_bounds = array<i64: 16, 8>}, {pipeline_mode = #tpu.pipeline_mode<synchronous>, transform_indices = @transform_1, window_bounds = array<i64: 8, 32>}, {pipeline_mode = #tpu.pipeline_mode<synchronous>, transform_indices = @transform_2, window_bounds = array<i64: 1, 32>}, {pipeline_mode = #tpu.pipeline_mode<synchronous>, transform_indices = @transform_3, window_bounds = array<i64: 32, 32>}, {pipeline_mode = #tpu.pipeline_mode<synchronous>, transform_indices = @transform_4, window_bounds = array<i64: 1, 32>}, {pipeline_mode = #tpu.pipeline_mode<synchronous>, transform_indices = @transform_5, window_bounds = array<i64: 32, 4>}, {pipeline_mode = #tpu.pipeline_mode<synchronous>, transform_indices = @transform_6, window_bounds = array<i64: 1, 4>}, {transform_indices = @transform_7, window_bounds = array<i64: 16, 128>}]} {
    %c0 = arith.constant 0 : index
    %c0_0 = arith.constant 0 : index
    %0 = vector.load %arg1[%c0, %c0_0] : memref<16x8xbf16, #tpu.memory_space<vmem>>, vector<16x8xbf16>
    %c0_1 = arith.constant 0 : index
    %c0_2 = arith.constant 0 : index
    %1 = vector.load %arg2[%c0_1, %c0_2] : memref<8x32xbf16, #tpu.memory_space<vmem>>, vector<8x32xbf16>
    %cst = arith.constant dense<0.000000e+00> : vector<16x32xf32>
    %2 = tpu.matmul %0, %1, %cst {dimension_numbers = #tpu.dot_dimension_numbers<[1], [0], [0], [1], [0, 0, 1, 1], [], []>} : vector<16x8xbf16>, vector<8x32xbf16>, vector<16x32xf32> -> vector<16x32xf32>
    %c0_3 = arith.constant 0 : index
    %c0_4 = arith.constant 0 : index
    %3 = vector.load %arg3[%c0_3, %c0_4] : memref<1x32xf32, #tpu.memory_space<vmem>>, vector<1x32xf32>
    %4 = vector.broadcast %3 : vector<1x32xf32> to vector<16x32xf32>
    %5 = arith.addf %2, %4 : vector<16x32xf32>
    %cst_5 = arith.constant 0.000000e+00 : f32
    %6 = vector.broadcast %cst_5 : f32 to vector<16x32xf32>
    %7 = arith.cmpf ogt, %5, %6 : vector<16x32xf32>
    %cst_6 = arith.constant 0.000000e+00 : f32
    %8 = vector.broadcast %cst_6 : f32 to vector<16x32xf32>
    %9 = arith.minimumf %5, %8 : vector<16x32xf32>
    %10 = math.exp %9 : vector<16x32xf32>
    %cst_7 = arith.constant 1.000000e+00 : f32
    %11 = vector.broadcast %cst_7 : f32 to vector<16x32xf32>
    %12 = arith.subf %10, %11 : vector<16x32xf32>
    %cst_8 = arith.constant 1.67326319 : f32
    %13 = vector.broadcast %cst_8 : f32 to vector<16x32xf32>
    %14 = arith.mulf %13, %12 : vector<16x32xf32>
    %15 = arith.select %7, %5, %14 : vector<16x32xi1>, vector<16x32xf32>
    %cst_9 = arith.constant 1.05070102 : f32
    %16 = vector.broadcast %cst_9 : f32 to vector<16x32xf32>
    %17 = arith.mulf %16, %15 : vector<16x32xf32>
    %18 = arith.truncf %17 : vector<16x32xf32> to vector<16x32xbf16>
    %c0_10 = arith.constant 0 : index
    %c0_11 = arith.constant 0 : index
    %19 = vector.load %arg4[%c0_10, %c0_11] : memref<32x32xbf16, #tpu.memory_space<vmem>>, vector<32x32xbf16>
    %cst_12 = arith.constant dense<0.000000e+00> : vector<16x32xf32>
    %20 = tpu.matmul %18, %19, %cst_12 {dimension_numbers = #tpu.dot_dimension_numbers<[1], [0], [0], [1], [0, 0, 1, 1], [], []>} : vector<16x32xbf16>, vector<32x32xbf16>, vector<16x32xf32> -> vector<16x32xf32>
    %c0_13 = arith.constant 0 : index
    %c0_14 = arith.constant 0 : index
    %21 = vector.load %arg5[%c0_13, %c0_14] : memref<1x32xf32, #tpu.memory_space<vmem>>, vector<1x32xf32>
    %22 = vector.broadcast %21 : vector<1x32xf32> to vector<16x32xf32>
    %23 = arith.addf %20, %22 : vector<16x32xf32>
    %cst_15 = arith.constant 0.000000e+00 : f32
    %24 = vector.broadcast %cst_15 : f32 to vector<16x32xf32>
    %25 = arith.cmpf ogt, %23, %24 : vector<16x32xf32>
    %cst_16 = arith.constant 0.000000e+00 : f32
    %26 = vector.broadcast %cst_16 : f32 to vector<16x32xf32>
    %27 = arith.minimumf %23, %26 : vector<16x32xf32>
    %28 = math.exp %27 : vector<16x32xf32>
    %cst_17 = arith.constant 1.000000e+00 : f32
    %29 = vector.broadcast %cst_17 : f32 to vector<16x32xf32>
    %30 = arith.subf %28, %29 : vector<16x32xf32>
    %cst_18 = arith.constant 1.67326319 : f32
    %31 = vector.broadcast %cst_18 : f32 to vector<16x32xf32>
    %32 = arith.mulf %31, %30 : vector<16x32xf32>
    %33 = arith.select %25, %23, %32 : vector<16x32xi1>, vector<16x32xf32>
    %cst_19 = arith.constant 1.05070102 : f32
    %34 = vector.broadcast %cst_19 : f32 to vector<16x32xf32>
    %35 = arith.mulf %34, %33 : vector<16x32xf32>
    %36 = arith.truncf %35 : vector<16x32xf32> to vector<16x32xbf16>
    %c0_20 = arith.constant 0 : index
    %c0_21 = arith.constant 0 : index
    %37 = vector.load %arg6[%c0_20, %c0_21] : memref<32x4xbf16, #tpu.memory_space<vmem>>, vector<32x4xbf16>
    %cst_22 = arith.constant dense<0.000000e+00> : vector<16x4xf32>
    %38 = tpu.matmul %36, %37, %cst_22 {dimension_numbers = #tpu.dot_dimension_numbers<[1], [0], [0], [1], [0, 0, 1, 1], [], []>} : vector<16x32xbf16>, vector<32x4xbf16>, vector<16x4xf32> -> vector<16x4xf32>
    %c0_23 = arith.constant 0 : index
    %c0_24 = arith.constant 0 : index
    %39 = vector.load %arg7[%c0_23, %c0_24] : memref<1x4xf32, #tpu.memory_space<vmem>>, vector<1x4xf32>
    %40 = vector.broadcast %39 : vector<1x4xf32> to vector<16x4xf32>
    %41 = arith.addf %38, %40 : vector<16x4xf32>
    %cst_25 = arith.constant dense<0xFF800000> : vector<16xf32>
    %42 = vector.multi_reduction <maximumf>, %41, %cst_25 [1] : vector<16x4xf32> to vector<16xf32>
    %43 = vector.shape_cast %42 : vector<16xf32> to vector<16x1xf32>
    %44 = vector.broadcast %43 : vector<16x1xf32> to vector<16x4xf32>
    %45 = arith.subf %41, %44 : vector<16x4xf32>
    %46 = math.exp %45 : vector<16x4xf32>
    %cst_26 = arith.constant dense<0.000000e+00> : vector<16xf32>
    %47 = vector.multi_reduction <add>, %46, %cst_26 [1] : vector<16x4xf32> to vector<16xf32>
    %48 = vector.shape_cast %47 : vector<16xf32> to vector<16x1xf32>
    %49 = math.log %48 : vector<16x1xf32>
    %50 = vector.broadcast %49 : vector<16x1xf32> to vector<16x4xf32>
    %51 = arith.subf %45, %50 : vector<16x4xf32>
    %52 = vector.broadcast %48 : vector<16x1xf32> to vector<16x4xf32>
    %53 = arith.divf %46, %52 : vector<16x4xf32>
    %54 = arith.mulf %53, %51 : vector<16x4xf32>
    %cst_27 = arith.constant dense<0.000000e+00> : vector<16xf32>
    %55 = vector.multi_reduction <add>, %54, %cst_27 [1] : vector<16x4xf32> to vector<16xf32>
    %56 = vector.shape_cast %55 : vector<16xf32> to vector<16x1xf32>
    %cst_28 = arith.constant 0.000000e+00 : f32
    %57 = vector.broadcast %cst_28 : f32 to vector<16x1xf32>
    %58 = arith.subf %57, %56 : vector<16x1xf32>
    %cst_29 = arith.constant 0.000000e+00 : f32
    %59 = vector.broadcast %cst_29 : f32 to vector<16x128xf32>
    %c0_30 = arith.constant 0 : index
    %c0_31 = arith.constant 0 : index
    %60 = vector.load %arg8[%c0_30, %c0_31] : memref<16x128xf32, #tpu.memory_space<vmem>>, vector<16x128xf32>
    tpu.vector_store %arg8[%c0_30, %c0_31], %59 {strides = array<i32>} : memref<16x128xf32, #tpu.memory_space<vmem>>, vector<16x128xf32>,
    %c0_32 = arith.constant 0 : index
    %c0_33 = arith.constant 0 : index
    %61 = vector.load %arg8[%c0_32, %c0_33] : memref<16x128xf32, #tpu.memory_space<vmem>>, vector<16x4xf32>
    tpu.vector_store %arg8[%c0_32, %c0_33], %51 {strides = array<i32>} : memref<16x128xf32, #tpu.memory_space<vmem>>, vector<16x4xf32>,
    %c0_34 = arith.constant 0 : index
    %c4 = arith.constant 4 : index
    %62 = vector.load %arg8[%c0_34, %c4] : memref<16x128xf32, #tpu.memory_space<vmem>>, vector<16x1xf32>
    tpu.vector_store %arg8[%c0_34, %c4], %58 {strides = array<i32>} : memref<16x128xf32, #tpu.memory_space<vmem>>, vector<16x1xf32>,
    return
  }
  func.func @transform_0(%arg0: i32) -> (i32, i32) {
    %c0_i32 = arith.constant 0 : i32
    %c0_i32_0 = arith.constant 0 : i32
    return %arg0, %c0_i32 : i32, i32
  }
  func.func @transform_1(%arg0: i32) -> (i32, i32) {
    %c0_i32 = arith.constant 0 : i32
    %c0_i32_0 = arith.constant 0 : i32
    %c0_i32_1 = arith.constant 0 : i32
    return %c0_i32, %c0_i32_0 : i32, i32
  }
  func.func @transform_2(%arg0: i32) -> (i32, i32) {
    %c0_i32 = arith.constant 0 : i32
    %c0_i32_0 = arith.constant 0 : i32
    %c0_i32_1 = arith.constant 0 : i32
    return %c0_i32, %c0_i32_0 : i32, i32
  }
  func.func @transform_3(%arg0: i32) -> (i32, i32) {
    %c0_i32 = arith.constant 0 : i32
    %c0_i32_0 = arith.constant 0 : i32
    %c0_i32_1 = arith.constant 0 : i32
    return %c0_i32, %c0_i32_0 : i32, i32
  }
  func.func @transform_4(%arg0: i32) -> (i32, i32) {
    %c0_i32 = arith.constant 0 : i32
    %c0_i32_0 = arith.constant 0 : i32
    %c0_i32_1 = arith.constant 0 : i32
    return %c0_i32, %c0_i32_0 : i32, i32
  }
  func.func @transform_5(%arg0: i32) -> (i32, i32) {
    %c0_i32 = arith.constant 0 : i32
    %c0_i32_0 = arith.constant 0 : i32
    %c0_i32_1 = arith.constant 0 : i32
    return %c0_i32, %c0_i32_0 : i32, i32
  }
  func.func @transform_6(%arg0: i32) -> (i32, i32) {
    %c0_i32 = arith.constant 0 : i32
    %c0_i32_0 = arith.constant 0 : i32
    %c0_i32_1 = arith.constant 0 : i32
    return %c0_i32, %c0_i32_0 : i32, i32
  }
  func.func @transform_7(%arg0: i32) -> (i32, i32) {
    %c0_i32 = arith.constant 0 : i32
    %c0_i32_0 = arith.constant 0 : i32
    return %arg0, %c0_i32 : i32, i32
  }
}

</mosaic_0001>

<llo_original>
// kernel: _actor_forward_pallas.1
$region0: #{_actor_forward_pallas.1}
  #allocation0 [shape = 'u32[]', space=smem, size = 0x4, offset = 0x4, fixed_abs, tag = 'smem constant byte address 0x4 - core index']
  #allocation1 [shape = 'u32[144,128]{1,0:T(1,128)}', space=vmem, size = 0x12000, scoped, tag = 'internal scratch']
  %s0 = inlined_call_operand.vmem [shape: bf16[16,8], index: 0, kind: input, shape index: {}]
  %s1 = inlined_call_operand.vmem [shape: bf16[8,32], index: 1, kind: input, shape index: {}]
  %s2 = inlined_call_operand.vmem [shape: f32[1,32], index: 2, kind: input, shape index: {}]
  %s3 = inlined_call_operand.vmem [shape: bf16[32,32], index: 3, kind: input, shape index: {}]
  %s4 = inlined_call_operand.vmem [shape: f32[1,32], index: 4, kind: input, shape index: {}]
  %s5 = inlined_call_operand.vmem [shape: bf16[32,4], index: 5, kind: input, shape index: {}]
  %s6 = inlined_call_operand.vmem [shape: f32[1,4], index: 6, kind: input, shape index: {}]
  %s7 = inlined_call_operand.vmem [shape: f32[16,128], index: 7, kind: output, shape index: {}]
  %s8 = sld [smem:[#allocation0]]
  $region38: #{_actor_forward_pallas.1} parent=0
    _
  %s10 = ssub.s32 1, %s8
  %s11 = scalar_select 0, %s10, %s8
  // Predicated region
  $region2: #{_actor_forward_pallas.1} parent=0 // pred_check
    _
  $region3: #{_actor_forward_pallas.1} parent=0 // pred_check_branch
    %13 = sbr.rel (0) target = $region5
  $region4: #{_actor_forward_pallas.1} parent=0 // pred_region
    _
  $region5: #{_actor_forward_pallas.1} parent=0 // pred_fallthru
    _
  // Predicated region
  $region6: #{_actor_forward_pallas.1} parent=0 // pred_check
    _
  $region7: #{_actor_forward_pallas.1} parent=0 // pred_check_branch
    %15 = sbr.rel (0) target = $region9
  $region8: #{_actor_forward_pallas.1} parent=0 // pred_region
    _
  $region9: #{_actor_forward_pallas.1} parent=0 // pred_fallthru
    _
  // Predicated region
  $region10: #{_actor_forward_pallas.1} parent=0 // pred_check
    _
  $region11: #{_actor_forward_pallas.1} parent=0 // pred_check_branch
    %17 = sbr.rel (0) target = $region13
  $region12: #{_actor_forward_pallas.1} parent=0 // pred_region
    _
  $region13: #{_actor_forward_pallas.1} parent=0 // pred_fallthru
    _
  // Predicated region
  $region14: #{_actor_forward_pallas.1} parent=0 // pred_check
    _
  $region15: #{_actor_forward_pallas.1} parent=0 // pred_check_branch
    %19 = sbr.rel (0) target = $region17
  $region16: #{_actor_forward_pallas.1} parent=0 // pred_region
    _
  $region17: #{_actor_forward_pallas.1} parent=0 // pred_fallthru
    _
  // Predicated region
  $region18: #{_actor_forward_pallas.1} parent=0 // pred_check
    _
  $region19: #{_actor_forward_pallas.1} parent=0 // pred_check_branch
    %21 = sbr.rel (0) target = $region21
  $region20: #{_actor_forward_pallas.1} parent=0 // pred_region
    _
  $region21: #{_actor_forward_pallas.1} parent=0 // pred_fallthru
    _
  // Predicated region
  $region22: #{_actor_forward_pallas.1} parent=0 // pred_check
    _
  $region23: #{_actor_forward_pallas.1} parent=0 // pred_check_branch
    %23 = sbr.rel (0) target = $region25
  $region24: #{_actor_forward_pallas.1} parent=0 // pred_region
    _
  $region25: #{_actor_forward_pallas.1} parent=0 // pred_fallthru
    _
  // Predicated region
  $region26: #{_actor_forward_pallas.1} parent=0 // pred_check
    _
  $region27: #{_actor_forward_pallas.1} parent=0 // pred_check_branch
    %25 = sbr.rel (0) target = $region29
  $region28: #{_actor_forward_pallas.1} parent=0 // pred_region
    _
  $region29: #{_actor_forward_pallas.1} parent=0 // pred_fallthru
    _
  %v27 = vld [vmem:[%s0] sm:$0xf]
  %v28 = vld [vmem:[%s0 + $0x4] sm:$0xf]
  %v29 = vld [vmem:[%s1] sm:$0xf]
  %v30 = vld [vmem:[%s2] sm:$0x1]
  %v32 = vlaneseq
  %v33 = vshrl.u32 %v32, 7
  %v34 = vsub.s32 0, %v33
  %v35 = vrot.slane %v30, %v34
  %v39 = vunpack.c.l.b16 %v27
  %v40 = vunpack.c.l.b16 %v28
  %v41 = vpack.c.b16 %v40, %v39
  %vm42 = vcmask 64512
  %v44 = vsel %vm42, %v41, 0
  %vm46 = vcmask 1043456
  %v48 = vsel %vm46, %v29, 0
  %50 = vmatprep.subr.bf16.mxu0 0
  %51 = vmatpush1.bf16.msra.mxu0 0
  %52 = vmatprep.subr.bf16.mxu0 0
  %53 = vmatpush1.bf16.msra.mxu0 0
  %54 = vmatprep.subr.bf16.mxu0 0
  %55 = vmatpush1.bf16.msra.mxu0 0
  %56 = vmatprep.subr.bf16.mxu0 0
  %57 = vmatpush1.bf16.msra.mxu0 0
  %58 = vmatprep.subr.bf16.mxu0 0
  %59 = vmatpush1.bf16.msra.mxu0 0
  %60 = vmatprep.subr.bf16.mxu0 0
  %61 = vmatpush1.bf16.msra.mxu0 0
  %62 = vmatprep.subr.bf16.mxu0 0
  %63 = vmatpush1.bf16.msra.mxu0 0
  %64 = vmatprep.subr.bf16.mxu0 0
  %65 = vmatpush1.bf16.msra.mxu0 %v48
  %66 = vmatprep.subr.bf16.mxu0 0
  %67 = vmatpush2.bf16.msra.mxu0 0
  %68 = vmatprep.subr.bf16.mxu0 0
  %69 = vmatpush2.bf16.msra.mxu0 0
  %70 = vmatprep.subr.bf16.mxu0 0
  %71 = vmatpush2.bf16.msra.mxu0 0
  %72 = vmatprep.subr.bf16.mxu0 0
  %73 = vmatpush2.bf16.msra.mxu0 0
  %74 = vmatprep.subr.bf16.mxu0 0
  %75 = vmatpush2.bf16.msra.mxu0 0
  %76 = vmatprep.subr.bf16.mxu0 0
  %77 = vmatpush2.bf16.msra.mxu0 0
  %78 = vmatprep.subr.bf16.mxu0 0
  %79 = vmatpush2.bf16.msra.mxu0 0
  %80 = vmatprep.subr.bf16.mxu0 0
  %81 = vmatpush2.bf16.msra.mxu0 0
  %82 = vmatprep.mubr.bf16.mxu0 0
  %83 = vmatmul.mubr.bf16.gmra.mxu0 %v44
  %v84 = vpop.f32.mrf.mxu0
  %v85 = vadd.f32 %v35, %v84
  %v86 = vpop.f32.mrf.mxu0
  %v87 = vpop.f32.mrf.mxu0
  %v88 = vadd.f32 %v35, %v87
  %v89 = vpop.f32.mrf.mxu0
  %90 = vdwg.mxu0
  %vm91 = vcmp.gt.f32.partialorder %v85, 0.0
  %vm92 = vcmp.gt.f32.partialorder %v88, 0.0
  %v93 = vmin.f32 %v85, 0.0
  %v94 = vmin.f32 %v88, 0.0
  %v95 = vmul.f32 %v93, 1.442695
  %v96 = vpow.pop %v95
  %v97 = vmul.f32 %v94, 1.442695
  %v98 = vpow.pop %v97
  %v99 = vsub.f32 %v96, 1.0
  %v100 = vsub.f32 %v98, 1.0
  %v101 = vmul.f32 %v99, 1.6732632
  %v102 = vmul.f32 %v100, 1.6732632
  %v103 = vsel %vm91, %v85, %v101
  %v104 = vsel %vm92, %v88, %v102
  %v105 = vmul.f32 %v103, 1.050701
  %v106 = vmul.f32 %v104, 1.050701
  %v107 = vpack.c.bf16 %v106, %v105
  %v108 = vld [vmem:[%s3] sm:$0xf]
  %v109 = vld [vmem:[%s3 + $0x4] sm:$0xf]
  %v110 = vld [vmem:[%s3 + $0x8] sm:$0xf]
  %v111 = vld [vmem:[%s3 + $0xc] sm:$0xf]
  %v112 = vld [vmem:[%s4] sm:$0x1]
  %v114 = vlaneseq
  %v115 = vshrl.u32 %v114, 7
  %v116 = vsub.s32 0, %v115
  %v117 = vrot.slane %v112, %v116
  %v123 = vunpack.c.l.b16 %v108
  %v124 = vunpack.c.l.b16 %v109
  %v125 = vunpack.c.l.b16 %v110
  %v126 = vunpack.c.l.b16 %v111
  %v127 = vpack.c.b16 %v124, %v123
  %v128 = vpack.c.b16 %v126, %v125
  %vm131 = vcmask 261120
  %v133 = vsel %vm131, %v107, 0
  %135 = vmatprep.subr.bf16.mxu0 0
  %136 = vmatpush1.bf16.msra.mxu0 0
  %137 = vmatprep.subr.bf16.mxu0 0
  %138 = vmatpush1.bf16.msra.mxu0 0
  %139 = vmatprep.subr.bf16.mxu0 0
  %140 = vmatpush1.bf16.msra.mxu0 0
  %141 = vmatprep.subr.bf16.mxu0 0
  %142 = vmatpush1.bf16.msra.mxu0 0
  %143 = vmatprep.subr.bf16.mxu0 0
  %144 = vmatpush1.bf16.msra.mxu0 0
  %145 = vmatprep.subr.bf16.mxu0 0
  %146 = vmatpush1.bf16.msra.mxu0 0
  %147 = vmatprep.subr.bf16.mxu0 0
  %148 = vmatpush1.bf16.msra.mxu0 %v128
  %149 = vmatprep.subr.bf16.mxu0 0
  %150 = vmatpush1.bf16.msra.mxu0 %v127
  %151 = vmatprep.subr.bf16.mxu0 0
  %152 = vmatpush2.bf16.msra.mxu0 0
  %153 = vmatprep.subr.bf16.mxu0 0
  %154 = vmatpush2.bf16.msra.mxu0 0
  %155 = vmatprep.subr.bf16.mxu0 0
  %156 = vmatpush2.bf16.msra.mxu0 0
  %157 = vmatprep.subr.bf16.mxu0 0
  %158 = vmatpush2.bf16.msra.mxu0 0
  %159 = vmatprep.subr.bf16.mxu0 0
  %160 = vmatpush2.bf16.msra.mxu0 0
  %161 = vmatprep.subr.bf16.mxu0 0
  %162 = vmatpush2.bf16.msra.mxu0 0
  %163 = vmatprep.subr.bf16.mxu0 0
  %164 = vmatpush2.bf16.msra.mxu0 0
  %165 = vmatprep.subr.bf16.mxu0 0
  %166 = vmatpush2.bf16.msra.mxu0 0
  %167 = vmatprep.mubr.bf16.mxu0 0
  %168 = vmatmul.mubr.bf16.gmra.mxu0 %v133
  %v169 = vpop.f32.mrf.mxu0
  %v170 = vadd.f32 %v117, %v169
  %v171 = vpop.f32.mrf.mxu0
  %v172 = vpop.f32.mrf.mxu0
  %v173 = vadd.f32 %v117, %v172
  %v174 = vpop.f32.mrf.mxu0
  %175 = vdwg.mxu0
  %vm176 = vcmp.gt.f32.partialorder %v170, 0.0
  %vm177 = vcmp.gt.f32.partialorder %v173, 0.0
  %v178 = vmin.f32 %v170, 0.0
  %v179 = vmin.f32 %v173, 0.0
  %v180 = vmul.f32 %v178, 1.442695
  %v181 = vpow.pop %v180
  %v182 = vmul.f32 %v179, 1.442695
  %v183 = vpow.pop %v182
  %v184 = vsub.f32 %v181, 1.0
  %v185 = vsub.f32 %v183, 1.0
  %v186 = vmul.f32 %v184, 1.6732632
  %v187 = vmul.f32 %v185, 1.6732632
  %v188 = vsel %vm176, %v170, %v186
  %v189 = vsel %vm177, %v173, %v187
  %v190 = vmul.f32 %v188, 1.050701
  %v191 = vmul.f32 %v189, 1.050701
  %v192 = vpack.c.bf16 %v191, %v190
  %v193 = vld [vmem:[%s5] sm:$0xf]
  %v194 = vld [vmem:[%s5 + $0x4] sm:$0xf]
  %v195 = vld [vmem:[%s5 + $0x8] sm:$0xf]
  %v196 = vld [vmem:[%s5 + $0xc] sm:$0xf]
  %v197 = vld [vmem:[%s6] sm:$0x1]
  %v199 = vlaneseq
  %v200 = vshrl.u32 %v199, 7
  %v201 = vsub.s32 0, %v200
  %v202 = vrot.slane %v197, %v201
  %v208 = vunpack.c.l.b16 %v193
  %v209 = vunpack.c.l.b16 %v194
  %v210 = vunpack.c.l.b16 %v195
  %v211 = vunpack.c.l.b16 %v196
  %v212 = vpack.c.b16 %v209, %v208
  %v213 = vpack.c.b16 %v211, %v210
  %v217 = vsel %vm131, %v192, 0
  %219 = vmatprep.subr.bf16.mxu0 0
  %220 = vmatpush1.bf16.msra.mxu0 0
  %221 = vmatprep.subr.bf16.mxu0 0
  %222 = vmatpush1.bf16.msra.mxu0 0
  %223 = vmatprep.subr.bf16.mxu0 0
  %224 = vmatpush1.bf16.msra.mxu0 0
  %225 = vmatprep.subr.bf16.mxu0 0
  %226 = vmatpush1.bf16.msra.mxu0 0
  %227 = vmatprep.subr.bf16.mxu0 0
  %228 = vmatpush1.bf16.msra.mxu0 0
  %229 = vmatprep.subr.bf16.mxu0 0
  %230 = vmatpush1.bf16.msra.mxu0 0
  %231 = vmatprep.subr.bf16.mxu0 0
  %232 = vmatpush1.bf16.msra.mxu0 %v213
  %233 = vmatprep.subr.bf16.mxu0 0
  %234 = vmatpush1.bf16.msra.mxu0 %v212
  %235 = vmatprep.subr.bf16.mxu0 0
  %236 = vmatpush2.bf16.msra.mxu0 0
  %237 = vmatprep.subr.bf16.mxu0 0
  %238 = vmatpush2.bf16.msra.mxu0 0
  %239 = vmatprep.subr.bf16.mxu0 0
  %240 = vmatpush2.bf16.msra.mxu0 0
  %241 = vmatprep.subr.bf16.mxu0 0
  %242 = vmatpush2.bf16.msra.mxu0 0
  %243 = vmatprep.subr.bf16.mxu0 0
  %244 = vmatpush2.bf16.msra.mxu0 0
  %245 = vmatprep.subr.bf16.mxu0 0
  %246 = vmatpush2.bf16.msra.mxu0 0
  %247 = vmatprep.subr.bf16.mxu0 0
  %248 = vmatpush2.bf16.msra.mxu0 0
  %249 = vmatprep.subr.bf16.mxu0 0
  %250 = vmatpush2.bf16.msra.mxu0 0
  %251 = vmatprep.mubr.bf16.mxu0 0
  %252 = vmatmul.mubr.bf16.gmra.mxu0 %v217
  %v253 = vpop.f32.mrf.mxu0
  %v254 = vadd.f32 %v202, %v253
  %v255 = vpop.f32.mrf.mxu0
  %v256 = vpop.f32.mrf.mxu0
  %v257 = vadd.f32 %v202, %v256
  %v258 = vpop.f32.mrf.mxu0
  %259 = vdwg.mxu0
  %vm260 = vcmask 31744
  %v261 = vsel %vm260, %v254, -inf
  %262 = vmax.xlane.f32.xlu0 %v261
  %v263 = vpop.xlane.xlu0 %262
  %v264 = vsel %vm260, %v257, -inf
  %265 = vmax.xlane.f32.xlu0 %v264
  %v266 = vpop.xlane.xlu0 %265
  %v267 = vsub.f32 %v254, %v263
  %v268 = vsub.f32 %v257, %v266
  %v269 = vmul.f32 %v267, 1.442695
  %v270 = vpow.pop %v269
  %v271 = vmul.f32 %v268, 1.442695
  %v272 = vpow.pop %v271
  %v273 = vsel %vm260, %v270, 0.0
  %274 = vadd.xlane.f32.xlu0 %v273
  %v275 = vpop.xlane.xlu0 %274
  %v276 = vsel %vm260, %v272, 0.0
  %277 = vadd.xlane.f32.xlu0 %v276
  %v278 = vpop.xlane.xlu0 %277
  %v279 = vlog2.pop %v275
  %v280 = vmul.f32 %v279, 0.6931472
  %v281 = vlog2.pop %v278
  %v282 = vmul.f32 %v281, 0.6931472
  %v283 = vsub.f32 %v267, %v280
  %v284 = vsub.f32 %v268, %v282
  %v285 = vrcp.pop %v275
  %v286 = vmul.f32 %v270, %v285
  %v287 = vrcp.pop %v278
  %v288 = vmul.f32 %v272, %v287
  %v289 = vmul.f32 %v286, %v283
  %v290 = vmul.f32 %v288, %v284
  %v291 = vsel %vm260, %v289, 0.0
  %292 = vadd.xlane.f32.xlu0 %v291
  %v293 = vpop.xlane.xlu0 %292
  %v294 = vsel %vm260, %v290, 0.0
  %295 = vadd.xlane.f32.xlu0 %v294
  %v296 = vpop.xlane.xlu0 %295
  %v297 = vsub.f32 0.0, %v293
  %v298 = vsub.f32 0.0, %v296
  %299 = vst [vmem:[%s7] sm:$0xff] 0.0
  %300 = vst [vmem:[%s7 + $0x8] sm:$0xff] 0.0
  %301 = vst.msk [vmem:[%s7] sm:$0xff] %vm260, %v283
  %302 = vst.msk [vmem:[%s7 + $0x8] sm:$0xff] %vm260, %v284
  %vm303 = vcmask 39968
  %304 = vst.msk [vmem:[%s7] sm:$0xff] %vm303, %v297
  %305 = vst.msk [vmem:[%s7 + $0x8] sm:$0xff] %vm303, %v298
  // Predicated region
  $region30: #{_actor_forward_pallas.1} parent=0 // pred_check
    _
  $region31: #{_actor_forward_pallas.1} parent=0 // pred_check_branch
    %307 = sbr.rel (0) target = $region33
  $region32: #{_actor_forward_pallas.1} parent=0 // pred_region
    _
  $region33: #{_actor_forward_pallas.1} parent=0 // pred_fallthru
    _
  // Predicated region
  $region34: #{_actor_forward_pallas.1} parent=0 // pred_check
    _
  $region35: #{_actor_forward_pallas.1} parent=0 // pred_check_branch
    %309 = sbr.rel (0) target = $region37
  $region36: #{_actor_forward_pallas.1} parent=0 // pred_region
    _
  $region37: #{_actor_forward_pallas.1} parent=0 // pred_fallthru
    _

</llo_original>
